<compile_context>
chip_gen: v5e
topology: v5e:2x2
jax: 0.10.0
libtpu: 0.0.40
codegen_flags: <defaults>
</compile_context>

<pallas_src>
import math

import jax
import jax.numpy as jnp
from jax import lax
from jax.experimental import pallas as pl
from jax.experimental.pallas import tpu as pltpu


def _gcn_kernel(text_ref, adj_ref, w_ref, p_ref, o_ref):
    # text_ref: (B, N, Fin)  adj_ref: (B, N, N)  w_ref: (Fin, Fout)
    # p_ref:    (3, Fout)    rows = [bias, gamma, beta]
    # o_ref:    (B, N, Fout)
    B, N, Fin = text_ref.shape
    Fout = w_ref.shape[1]

    adj = adj_ref[...]                                         # (B, N, N)
    text = text_ref[...]                                       # (B, N, Fin)

    # Exact degree normalization folded into adj (N*N multiplies per batch).
    denom = jnp.sum(adj, axis=2, keepdims=True) + 1.0          # (B, N, 1)
    adj_n = adj / denom

    # Reassociated aggregation in the narrow Fin space (Fin << Fout).
    agg = jnp.einsum("bnm,bmf->bnf", adj_n, text,
                     preferred_element_type=jnp.float32)       # (B, N, Fin)

    # One wide matmul for all batches: M = B*N rows on the MXU.
    out = jnp.dot(agg.reshape(B * N, Fin), w_ref[...],
                  preferred_element_type=jnp.float32)          # (B*N, Fout)

    params = p_ref[...]                                        # (3, Fout)
    bias = params[0:1, :]
    gamma = params[1:2, :]
    beta = params[2:3, :]

    # + bias, LayerNorm over features (eps = 1e-5, like nn.LayerNorm),
    # statistics in a single reduce pass.
    out = out + bias
    inv_f = jnp.float32(1.0 / Fout)
    mean = jnp.sum(out, axis=-1, keepdims=True) * inv_f        # (B*N, 1)
    ex2 = jnp.sum(out * out, axis=-1, keepdims=True) * inv_f   # (B*N, 1)
    var = ex2 - mean * mean
    y = (out - mean) * lax.rsqrt(var + 1e-5)
    y = y * gamma + beta

    # ReLU (dropout is identity in eval mode).
    y = jnp.maximum(y, 0.0)

    # Single lane-dense full-block store.
    o_ref[...] = y.reshape(B, N, Fout).astype(o_ref.dtype)


def graph_convolution(text, adj, weight, bias, gamma, beta):
    """text: (B, N, Fin) f32; adj: (B, N, N) f32; weight: (Fin, Fout);
    bias/gamma/beta: (Fout,).  Returns (B, N, Fout) f32."""
    B, N, Fin = text.shape
    Fout = weight.shape[1]
    assert adj.shape == (B, N, N)

    # Stack the three (Fout,) params into one lane-major (3, Fout) array:
    # one DMA instead of three.
    params = jnp.stack([bias, gamma, beta], axis=0)            # (3, Fout)

    vmem = pl.BlockSpec(memory_space=pltpu.MemorySpace.VMEM)
    return pl.pallas_call(
        _gcn_kernel,
        out_shape=jax.ShapeDtypeStruct((B, N, Fout), jnp.float32),
        in_specs=[vmem, vmem, vmem, vmem],
        out_specs=vmem,
    )(text, adj, weight, params)


if __name__ == "__main__":
    # Small shapes consistent with the module: LayerNorm(1024) forces Fout=1024.
    B, N, Fin, Fout = 2, 8, 32, 1024

    key = jax.random.PRNGKey(0)
    k_text, k_adj, k_w, k_b = jax.random.split(key, 4)

    text = jax.random.normal(k_text, (B, N, Fin), dtype=jnp.float32)
    adj = (jax.random.uniform(k_adj, (B, N, N), dtype=jnp.float32) > 0.5
           ).astype(jnp.float32)

    # Deterministic parameter init mirroring the PyTorch module:
    # kaiming_uniform_(weight, a=sqrt(5)) on a (Fin, Fout) tensor ->
    # fan_in = Fout (PyTorch convention: dim 1), bound = 1/sqrt(fan_in)
    w_fan_in = Fout
    w_bound = 1.0 / math.sqrt(w_fan_in)
    weight = jax.random.uniform(k_w, (Fin, Fout), dtype=jnp.float32,
                                minval=-w_bound, maxval=w_bound)
    b_bound = 1.0 / math.sqrt(w_fan_in)
    bias = jax.random.uniform(k_b, (Fout,), dtype=jnp.float32,
                              minval=-b_bound, maxval=b_bound)
    # LayerNorm affine params (PyTorch default init: gamma=1, beta=0)
    gamma = jnp.ones((Fout,), dtype=jnp.float32)
    beta = jnp.zeros((Fout,), dtype=jnp.float32)

    out = graph_convolution(text, adj, weight, bias, gamma, beta)
    out = jax.block_until_ready(out)

    # Pure-JAX reference check (same op order as the PyTorch module).
    hidden = jnp.einsum("bnf,fo->bno", text, weight)
    denom = jnp.sum(adj, axis=2, keepdims=True) + 1.0
    ref = jnp.einsum("bnm,bmo->bno", adj, hidden) / denom
    ref = ref + bias
    mean = jnp.mean(ref, axis=-1, keepdims=True)
    var = jnp.mean((ref - mean) ** 2, axis=-1, keepdims=True)
    ref = (ref - mean) / jnp.sqrt(var + 1e-5) * gamma + beta
    ref = jnp.maximum(ref, 0.0)

    assert out.shape == (B, N, Fout)
    # Exact reciprocal now; remaining difference is f32 matmul reassociation
    # and the one-pass vs two-pass LayerNorm statistics.
    assert jnp.allclose(out, ref, atol=1e-4, rtol=1e-4)

    print("KERNEL_OK")
</pallas_src>

<mosaic_0001>
module attributes {stable_mosaic.version = 11 : i64} {
  func.func @_gcn_kernel(%arg0: memref<2x8x32xf32, #tpu.memory_space<vmem>>, %arg1: memref<2x8x8xf32, #tpu.memory_space<vmem>>, %arg2: memref<32x1024xf32, #tpu.memory_space<vmem>>, %arg3: memref<3x1024xf32, #tpu.memory_space<vmem>>, %arg4: memref<2x8x1024xf32, #tpu.memory_space<vmem>>) attributes {dimension_semantics = [], scalar_prefetch = 0 : i64, scratch_operands = 0 : i64, tpu.core_type = #tpu.core_type<tc>} {
    %c0 = arith.constant 0 : index
    %c0_0 = arith.constant 0 : index
    %c0_1 = arith.constant 0 : index
    %0 = vector.load %arg1[%c0, %c0_0, %c0_1] : memref<2x8x8xf32, #tpu.memory_space<vmem>>, vector<2x8x8xf32>
    %c0_2 = arith.constant 0 : index
    %c0_3 = arith.constant 0 : index
    %c0_4 = arith.constant 0 : index
    %1 = vector.load %arg0[%c0_2, %c0_3, %c0_4] : memref<2x8x32xf32, #tpu.memory_space<vmem>>, vector<2x8x32xf32>
    %cst = arith.constant dense<0.000000e+00> : vector<2x8xf32>
    %2 = vector.multi_reduction <add>, %0, %cst [2] : vector<2x8x8xf32> to vector<2x8xf32>
    %3 = vector.shape_cast %2 : vector<2x8xf32> to vector<2x8x1xf32>
    %cst_5 = arith.constant 1.000000e+00 : f32
    %4 = vector.broadcast %cst_5 : f32 to vector<2x8x1xf32>
    %5 = arith.addf %3, %4 : vector<2x8x1xf32>
    %6 = vector.broadcast %5 : vector<2x8x1xf32> to vector<2x8x8xf32>
    %7 = arith.divf %0, %6 : vector<2x8x8xf32>
    "tpu.trace_start"() <{level = 10 : i32, message = "bnm,bmf->bnf"}> : () -> ()
    %cst_6 = arith.constant dense<0.000000e+00> : vector<2x8x32xf32>
    %8 = tpu.matmul %7, %1, %cst_6 {dimension_numbers = #tpu.dot_dimension_numbers<[2], [1], [1], [2], [0, 0, 0, 1, 1, 2], [0], [0]>} : vector<2x8x8xf32>, vector<2x8x32xf32>, vector<2x8x32xf32> -> vector<2x8x32xf32>
    "tpu.trace_stop"() : () -> ()
    %9 = vector.shape_cast %8 : vector<2x8x32xf32> to vector<16x32xf32>
    %c0_7 = arith.constant 0 : index
    %c0_8 = arith.constant 0 : index
    %10 = vector.load %arg2[%c0_7, %c0_8] : memref<32x1024xf32, #tpu.memory_space<vmem>>, vector<32x1024xf32>
    %cst_9 = arith.constant dense<0.000000e+00> : vector<16x1024xf32>
    %11 = tpu.matmul %9, %10, %cst_9 {dimension_numbers = #tpu.dot_dimension_numbers<[1], [0], [0], [1], [0, 0, 1, 1], [], []>} : vector<16x32xf32>, vector<32x1024xf32>, vector<16x1024xf32> -> vector<16x1024xf32>
    %c0_10 = arith.constant 0 : index
    %c0_11 = arith.constant 0 : index
    %12 = vector.load %arg3[%c0_10, %c0_11] : memref<3x1024xf32, #tpu.memory_space<vmem>>, vector<3x1024xf32>
    %13 = vector.extract_strided_slice %12 {offsets = [0, 0], sizes = [1, 1024], strides = [1, 1]} : vector<3x1024xf32> to vector<1x1024xf32>
    %14 = vector.extract_strided_slice %12 {offsets = [1, 0], sizes = [1, 1024], strides = [1, 1]} : vector<3x1024xf32> to vector<1x1024xf32>
    %15 = vector.extract_strided_slice %12 {offsets = [2, 0], sizes = [1, 1024], strides = [1, 1]} : vector<3x1024xf32> to vector<1x1024xf32>
    %16 = vector.broadcast %13 : vector<1x1024xf32> to vector<16x1024xf32>
    %17 = arith.addf %11, %16 : vector<16x1024xf32>
    %cst_12 = arith.constant dense<0.000000e+00> : vector<16xf32>
    %18 = vector.multi_reduction <add>, %17, %cst_12 [1] : vector<16x1024xf32> to vector<16xf32>
    %19 = vector.shape_cast %18 : vector<16xf32> to vector<16x1xf32>
    %cst_13 = arith.constant 9.765625E-4 : f32
    %20 = vector.broadcast %cst_13 : f32 to vector<16x1xf32>
    %21 = arith.mulf %19, %20 : vector<16x1xf32>
    %22 = arith.mulf %17, %17 : vector<16x1024xf32>
    %cst_14 = arith.constant dense<0.000000e+00> : vector<16xf32>
    %23 = vector.multi_reduction <add>, %22, %cst_14 [1] : vector<16x1024xf32> to vector<16xf32>
    %24 = vector.shape_cast %23 : vector<16xf32> to vector<16x1xf32>
    %cst_15 = arith.constant 9.765625E-4 : f32
    %25 = vector.broadcast %cst_15 : f32 to vector<16x1xf32>
    %26 = arith.mulf %24, %25 : vector<16x1xf32>
    %27 = arith.mulf %21, %21 : vector<16x1xf32>
    %28 = arith.subf %26, %27 : vector<16x1xf32>
    %29 = vector.broadcast %21 : vector<16x1xf32> to vector<16x1024xf32>
    %30 = arith.subf %17, %29 : vector<16x1024xf32>
    %cst_16 = arith.constant 9.99999974E-6 : f32
    %31 = vector.broadcast %cst_16 : f32 to vector<16x1xf32>
    %32 = arith.addf %28, %31 : vector<16x1xf32>
    %33 = math.rsqrt %32 : vector<16x1xf32>
    %34 = vector.broadcast %33 : vector<16x1xf32> to vector<16x1024xf32>
    %35 = arith.mulf %30, %34 : vector<16x1024xf32>
    %36 = vector.broadcast %14 : vector<1x1024xf32> to vector<16x1024xf32>
    %37 = arith.mulf %35, %36 : vector<16x1024xf32>
    %38 = vector.broadcast %15 : vector<1x1024xf32> to vector<16x1024xf32>
    %39 = arith.addf %37, %38 : vector<16x1024xf32>
    %cst_17 = arith.constant 0.000000e+00 : f32
    %40 = vector.broadcast %cst_17 : f32 to vector<16x1024xf32>
    %41 = arith.maximumf %39, %40 : vector<16x1024xf32>
    %42 = vector.shape_cast %41 : vector<16x1024xf32> to vector<2x8x1024xf32>
    %c0_18 = arith.constant 0 : index
    %c0_19 = arith.constant 0 : index
    %c0_20 = arith.constant 0 : index
    %43 = vector.load %arg4[%c0_18, %c0_19, %c0_20] : memref<2x8x1024xf32, #tpu.memory_space<vmem>>, vector<2x8x1024xf32>
    tpu.vector_store %arg4[%c0_18, %c0_19, %c0_20], %42 {strides = array<i32>} : memref<2x8x1024xf32, #tpu.memory_space<vmem>>, vector<2x8x1024xf32>,
    return
  }
}

</mosaic_0001>

<llo_original>
// kernel: tpu_custom_call.1
$region0: #{tpu_custom_call.1}
  #allocation0 [shape = 'u32[]', space=smem, size = 0x4, offset = 0x4, fixed_abs, tag = 'smem constant byte address 0x4 - core index']
  #allocation1 [shape = 'u32[72,128]{1,0:T(1,128)}', space=vmem, size = 0x9000, scoped, tag = 'internal scratch']
  %s0 = inlined_call_operand.hbm [shape: f32[2,8,32], index: 0, kind: input, shape index: {}]
  %s1 = inlined_call_operand.hbm [shape: f32[2,8,8], index: 1, kind: input, shape index: {}]
  %s2 = inlined_call_operand.hbm [shape: f32[32,1024], index: 2, kind: input, shape index: {}]
  %s3 = inlined_call_operand.hbm [shape: f32[3,1024], index: 3, kind: input, shape index: {}]
  %s4 = inlined_call_operand.hbm [shape: f32[2,8,1024], index: 4, kind: output, shape index: {}]
  %s5 = sld [smem:[#allocation0]]
  $region42: #{tpu_custom_call.1} parent=0
    _
  %s7 = ssub.s32 1, %s5
  %s8 = scalar_select 0, %s7, %s5
  $region1: #{tpu_custom_call.1} parent=0
    #allocation2 [shape = 'u8[8192]{0}', space=vmem, size = 0x2000, scoped, tag = 'input window, operand 0, single buffered']
    #allocation3 [shape = 's32[1]{0}', space=sflag, size = 0x4, scoped, tag = 'scoped memory for tpu_custom_call.1']
    #allocation4 [shape = 's32[1]{0}', space=sflag, size = 0x4, scoped, tag = 'scoped memory for tpu_custom_call.1']
    #allocation5 [shape = 'u8[8192]{0}', space=vmem, size = 0x2000, scoped, tag = 'input window, operand 1, single buffered']
    #allocation6 [shape = 's32[1]{0}', space=sflag, size = 0x4, scoped, tag = 'scoped memory for tpu_custom_call.1']
    #allocation7 [shape = 'u8[131072]{0}', space=vmem, size = 0x20000, scoped, tag = 'input window, operand 2, single buffered']
    #allocation8 [shape = 'u8[16384]{0}', space=vmem, size = 0x4000, scoped, tag = 'input window, operand 3, single buffered']
    #allocation9 [shape = 's32[1]{0}', space=sflag, size = 0x4, scoped, tag = 'scoped memory for tpu_custom_call.1']
    #allocation10 [shape = 'u8[65536]{0}', space=vmem, size = 0x10000, scoped, tag = 'output window, operand 0, single buffered']
    %9 = vsyncpa [#allocation3], 0
    %10 = vsyncpa [#allocation6], 0
    %11 = vsyncpa [#allocation9], 0
    %12 = vsyncpa [#allocation4], 0
    // Predicated region
    $region2: #{tpu_custom_call.1} parent=1 // pred_check
      _
    $region3: #{tpu_custom_call.1} parent=1 // pred_check_branch
      %14 = sbr.rel (0) target = $region5
    $region4: #{tpu_custom_call.1} parent=1 // pred_region
      %16 = vsyncadd [#allocation3], 0
      %s17 = sshll.u32 %s0, 4
      %s18 = int_to_ptr.hbm [resolvable:$true] %s17
      %s19 = sshll.u32 [#allocation2], 4
      %s20 = int_to_ptr.vmem [resolvable:$true] %s19
      %25 = dma.hbm_to_vmem [thread:$0]  %s18, 256, %s20, [#allocation3], 128, 128, 8
    $region5: #{tpu_custom_call.1} parent=1 // pred_fallthru
      _
    // Predicated region
    $region6: #{tpu_custom_call.1} parent=1 // pred_check
      _
    $region7: #{tpu_custom_call.1} parent=1 // pred_check_branch
      %27 = sbr.rel (0) target = $region9
    $region8: #{tpu_custom_call.1} parent=1 // pred_region
      %29 = vsyncadd [#allocation6], 0
      %s30 = sshll.u32 %s1, 4
      %s31 = int_to_ptr.hbm [resolvable:$true] %s30
      %s32 = sshll.u32 [#allocation5], 4
      %s33 = int_to_ptr.vmem [resolvable:$true] %s32
      %38 = dma.hbm_to_vmem [thread:$0]  %s31, 256, %s33, [#allocation6], 128, 128, 8
    $region9: #{tpu_custom_call.1} parent=1 // pred_fallthru
      _
    // Predicated region
    $region10: #{tpu_custom_call.1} parent=1 // pred_check
      _
    $region11: #{tpu_custom_call.1} parent=1 // pred_check_branch
      %40 = sbr.rel (0) target = $region13
    $region12: #{tpu_custom_call.1} parent=1 // pred_region
      %42 = vsyncadd [#allocation6], 0
      %s43 = sshll.u32 %s2, 4
      %s44 = int_to_ptr.hbm [resolvable:$true] %s43
      %s45 = sshll.u32 [#allocation7], 4
      %s46 = int_to_ptr.vmem [resolvable:$true] %s45
      %51 = dma.hbm_to_vmem [thread:$0]  %s44, 4096, %s46, [#allocation6], 1024, 1024, 64
    $region13: #{tpu_custom_call.1} parent=1 // pred_fallthru
      _
    // Predicated region
    $region14: #{tpu_custom_call.1} parent=1 // pred_check
      _
    $region15: #{tpu_custom_call.1} parent=1 // pred_check_branch
      %53 = sbr.rel (0) target = $region17
    $region16: #{tpu_custom_call.1} parent=1 // pred_region
      %55 = vsyncadd [#allocation9], 0
      %s57 = sshll.u32 %s3, 4
      %s58 = int_to_ptr.hbm [resolvable:$true] %s57
      %s59 = sshll.u32 [#allocation8], 4
      %s60 = int_to_ptr.vmem [resolvable:$true] %s59
      %62 = dma.hbm_to_vmem [thread:$0]  %s58, 512, %s60, [#allocation9]
    $region17: #{tpu_custom_call.1} parent=1 // pred_fallthru
      _
    // Predicated region
    $region18: #{tpu_custom_call.1} parent=1 // pred_check
      _
    $region19: #{tpu_custom_call.1} parent=1 // pred_check_branch
      %64 = sbr.rel (0) target = $region21
    $region20: #{tpu_custom_call.1} parent=1 // pred_region
      %66 = dma.done [#allocation3], 256
    $region21: #{tpu_custom_call.1} parent=1 // pred_fallthru
      _
    // Predicated region
    $region22: #{tpu_custom_call.1} parent=1 // pred_check
      _
    $region23: #{tpu_custom_call.1} parent=1 // pred_check_branch
      %68 = sbr.rel (0) target = $region25
    $region24: #{tpu_custom_call.1} parent=1 // pred_region
      %70 = dma.done [#allocation6], 256
    $region25: #{tpu_custom_call.1} parent=1 // pred_fallthru
      _
    // Predicated region
    $region26: #{tpu_custom_call.1} parent=1 // pred_check
      _
    $region27: #{tpu_custom_call.1} parent=1 // pred_check_branch
      %72 = sbr.rel (0) target = $region29
    $region28: #{tpu_custom_call.1} parent=1 // pred_region
      %74 = dma.done [#allocation6], 4096
    $region29: #{tpu_custom_call.1} parent=1 // pred_fallthru
      _
    // Predicated region
    $region30: #{tpu_custom_call.1} parent=1 // pred_check
      _
    $region31: #{tpu_custom_call.1} parent=1 // pred_check_branch
      %76 = sbr.rel (0) target = $region33
    $region32: #{tpu_custom_call.1} parent=1 // pred_region
      %78 = dma.done [#allocation9], 512
    $region33: #{tpu_custom_call.1} parent=1 // pred_fallthru
      _
    %v79 = vld [vmem:[#allocation5] sm:$0xff]
    %v80 = vld [vmem:[#allocation5 + $0x8] sm:$0xff]
    %v81 = vld [vmem:[#allocation2] sm:$0xff]
    %v82 = vld [vmem:[#allocation2 + $0x8] sm:$0xff]
    %vm83 = vcmask 64512
    %v84 = vsel %vm83, %v79, 0.0
    %85 = vadd.xlane.f32.xlu0 %v84
    %v86 = vpop.xlane.xlu0 %85
    %v87 = vsel %vm83, %v80, 0.0
    %88 = vadd.xlane.f32.xlu0 %v87
    %v89 = vpop.xlane.xlu0 %88
    %v90 = vadd.f32 %v86, 1.0
    %v91 = vadd.f32 %v89, 1.0
    %v92 = vrcp.pop %v90
    %v93 = vmul.f32 %v90, %v92
    %v94 = vsub.f32 1.0, %v93
    %v95 = vmul.f32 %v92, %v94
    %v96 = vadd.f32 %v92, %v95
    %vm97 = vweird.f32 %v90
    %vm98 = vweird.f32 %v92
    %vm99 = vmor %vm97, %vm98
    %v100 = vsel %vm99, %v92, %v96
    %v101 = vand.u32 2147483647, %v90
    %vm102 = vcmp.eq.f32.partialorder %v101, 8.507059e+37
    %v103 = vand.u32 %v90, 2147483648
    %v104 = vor.u32 1.1754944e-38, %v103
    %v105 = vsel %vm102, %v104, %v100
    %v106 = vmul.f32 %v79, %v105
    %v107 = vrcp.pop %v91
    %v108 = vmul.f32 %v91, %v107
    %v109 = vsub.f32 1.0, %v108
    %v110 = vmul.f32 %v107, %v109
    %v111 = vadd.f32 %v107, %v110
    %vm112 = vweird.f32 %v91
    %vm113 = vweird.f32 %v107
    %vm114 = vmor %vm112, %vm113
    %v115 = vsel %vm114, %v107, %v111
    %v116 = vand.u32 2147483647, %v91
    %vm117 = vcmp.eq.f32.partialorder %v116, 8.507059e+37
    %v118 = vand.u32 %v91, 2147483648
    %v119 = vor.u32 1.1754944e-38, %v118
    %v120 = vsel %vm117, %v119, %v115
    %v121 = vmul.f32 %v80, %v120
    %v123 = vsel %vm83, %v106, 0
    %125 = vmatpush.msra.mxu0 0.0
    %126 = vmatpush.msra.mxu0 0.0
    %127 = vmatpush.msra.mxu0 0.0
    %128 = vmatpush.msra.mxu0 0.0
    %129 = vmatpush.msra.mxu0 0.0
    %130 = vmatpush.msra.mxu0 0.0
    %131 = vmatpush.msra.mxu0 0.0
    %132 = vmatpush.msra.mxu0 0.0
    %133 = vmatpush.msra.mxu0 0.0
    %134 = vmatpush.msra.mxu0 0.0
    %135 = vmatpush.msra.mxu0 0.0
    %136 = vmatpush.msra.mxu0 0.0
    %137 = vmatpush.msra.mxu0 0.0
    %138 = vmatpush.msra.mxu0 0.0
    %139 = vmatpush.msra.mxu0 0.0
    %140 = vmatpush.msra.mxu0 %v81
    %141 = vmatmul.f32.gmra.mxu0 %v123
    %v142 = vpop.f32.mrf.mxu0
    %v143 = vadd.f32 0.0, %v142
    %144 = vdwg.mxu0
    %v146 = vsel %vm83, %v121, 0
    %148 = vmatpush.msra.mxu0 0.0
    %149 = vmatpush.msra.mxu0 0.0
    %150 = vmatpush.msra.mxu0 0.0
    %151 = vmatpush.msra.mxu0 0.0
    %152 = vmatpush.msra.mxu0 0.0
    %153 = vmatpush.msra.mxu0 0.0
    %154 = vmatpush.msra.mxu0 0.0
    %155 = vmatpush.msra.mxu0 0.0
    %156 = vmatpush.msra.mxu0 0.0
    %157 = vmatpush.msra.mxu0 0.0
    %158 = vmatpush.msra.mxu0 0.0
    %159 = vmatpush.msra.mxu0 0.0
    %160 = vmatpush.msra.mxu0 0.0
    %161 = vmatpush.msra.mxu0 0.0
    %162 = vmatpush.msra.mxu0 0.0
    %163 = vmatpush.msra.mxu0 %v82
    %164 = vmatmul.f32.gmra.mxu0 %v146
    %v165 = vpop.f32.mrf.mxu0
    %v166 = vadd.f32 0.0, %v165
    %167 = vdwg.mxu0
    %v168 = vld [vmem:[#allocation7] sm:$0xff]
    %v169 = vld [vmem:[#allocation7 + $0x8] sm:$0xff]
    %v170 = vld [vmem:[#allocation7 + $0x10] sm:$0xff]
    %v171 = vld [vmem:[#allocation7 + $0x18] sm:$0xff]
    %v172 = vld [vmem:[#allocation7 + $0x20] sm:$0xff]
    %v173 = vld [vmem:[#allocation7 + $0x28] sm:$0xff]
    %v174 = vld [vmem:[#allocation7 + $0x30] sm:$0xff]
    %v175 = vld [vmem:[#allocation7 + $0x38] sm:$0xff]
    %v176 = vld [vmem:[#allocation7 + $0x40] sm:$0xff]
    %v177 = vld [vmem:[#allocation7 + $0x48] sm:$0xff]
    %v178 = vld [vmem:[#allocation7 + $0x50] sm:$0xff]
    %v179 = vld [vmem:[#allocation7 + $0x58] sm:$0xff]
    %v180 = vld [vmem:[#allocation7 + $0x60] sm:$0xff]
    %v181 = vld [vmem:[#allocation7 + $0x68] sm:$0xff]
    %v182 = vld [vmem:[#allocation7 + $0x70] sm:$0xff]
    %v183 = vld [vmem:[#allocation7 + $0x78] sm:$0xff]
    %v184 = vld [vmem:[#allocation7 + $0x80] sm:$0xff]
    %v185 = vld [vmem:[#allocation7 + $0x88] sm:$0xff]
    %v186 = vld [vmem:[#allocation7 + $0x90] sm:$0xff]
    %v187 = vld [vmem:[#allocation7 + $0x98] sm:$0xff]
    %v188 = vld [vmem:[#allocation7 + $0xa0] sm:$0xff]
    %v189 = vld [vmem:[#allocation7 + $0xa8] sm:$0xff]
    %v190 = vld [vmem:[#allocation7 + $0xb0] sm:$0xff]
    %v191 = vld [vmem:[#allocation7 + $0xb8] sm:$0xff]
    %v192 = vld [vmem:[#allocation7 + $0xc0] sm:$0xff]
    %v193 = vld [vmem:[#allocation7 + $0xc8] sm:$0xff]
    %v194 = vld [vmem:[#allocation7 + $0xd0] sm:$0xff]
    %v195 = vld [vmem:[#allocation7 + $0xd8] sm:$0xff]
    %v196 = vld [vmem:[#allocation7 + $0xe0] sm:$0xff]
    %v197 = vld [vmem:[#allocation7 + $0xe8] sm:$0xff]
    %v198 = vld [vmem:[#allocation7 + $0xf0] sm:$0xff]
    %v199 = vld [vmem:[#allocation7 + $0xf8] sm:$0xff]
    %v200 = vld [vmem:[#allocation8] sm:$0x77]
    %v201 = vld [vmem:[#allocation8 + $0x8] sm:$0x77]
    %v202 = vld [vmem:[#allocation8 + $0x10] sm:$0x77]
    %v203 = vld [vmem:[#allocation8 + $0x18] sm:$0x77]
    %v208 = vperm.slane %v200, 0
    %v209 = vperm.slane %v200, 4
    %v210 = vperm.slane %v201, 0
    %v211 = vperm.slane %v201, 4
    %v212 = vperm.slane %v202, 0
    %v213 = vperm.slane %v202, 4
    %v214 = vperm.slane %v203, 0
    %v215 = vperm.slane %v203, 4
    %v224 = vperm.slane %v208, 0
    %v225 = vperm.slane %v209, 0
    %v226 = vperm.slane %v210, 0
    %v227 = vperm.slane %v211, 0
    %v228 = vperm.slane %v212, 0
    %v229 = vperm.slane %v213, 0
    %v230 = vperm.slane %v214, 0
    %v231 = vperm.slane %v215, 0
    %vm232 = vcmask 261120
    %v234 = vsel %vm232, %v143, 0
    %v237 = vsel %vm232, %v166, 0
    %239 = vmatpush.msra.mxu0 0.0
    %240 = vmatpush.msra.mxu0 0.0
    %241 = vmatpush.msra.mxu0 0.0
    %242 = vmatpush.msra.mxu0 0.0
    %243 = vmatpush.msra.mxu0 0.0
    %244 = vmatpush.msra.mxu0 0.0
    %245 = vmatpush.msra.mxu0 0.0
    %246 = vmatpush.msra.mxu0 0.0
    %247 = vmatpush.msra.mxu0 0.0
    %248 = vmatpush.msra.mxu0 0.0
    %249 = vmatpush.msra.mxu0 0.0
    %250 = vmatpush.msra.mxu0 0.0
    %251 = vmatpush.msra.mxu0 %v192
    %252 = vmatpush.msra.mxu0 %v184
    %253 = vmatpush.msra.mxu0 %v176
    %254 = vmatpush.msra.mxu0 %v168
    %255 = vmatmul.f32.gmra.mxu0 %v234
    %v256 = vpop.f32.mrf.mxu0
    %v257 = vadd.f32 %v224, %v256
    %258 = vmatmul.f32.gmra.mxu0 %v237
    %v259 = vpop.f32.mrf.mxu0
    %v260 = vadd.f32 %v224, %v259
    %261 = vdwg.mxu0
    %262 = vmatpush.msra.mxu0 0.0
    %263 = vmatpush.msra.mxu0 0.0
    %264 = vmatpush.msra.mxu0 0.0
    %265 = vmatpush.msra.mxu0 0.0
    %266 = vmatpush.msra.mxu0 0.0
    %267 = vmatpush.msra.mxu0 0.0
    %268 = vmatpush.msra.mxu0 0.0
    %269 = vmatpush.msra.mxu0 0.0
    %270 = vmatpush.msra.mxu0 0.0
    %271 = vmatpush.msra.mxu0 0.0
    %272 = vmatpush.msra.mxu0 0.0
    %273 = vmatpush.msra.mxu0 0.0
    %274 = vmatpush.msra.mxu0 %v193
    %275 = vmatpush.msra.mxu0 %v185
    %276 = vmatpush.msra.mxu0 %v177
    %277 = vmatpush.msra.mxu0 %v169
    %278 = vmatmul.f32.gmra.mxu0 %v234
    %v279 = vpop.f32.mrf.mxu0
    %v280 = vadd.f32 %v225, %v279
    %281 = vmatmul.f32.gmra.mxu0 %v237
    %v282 = vpop.f32.mrf.mxu0
    %v283 = vadd.f32 %v225, %v282
    %284 = vdwg.mxu0
    %285 = vmatpush.msra.mxu0 0.0
    %286 = vmatpush.msra.mxu0 0.0
    %287 = vmatpush.msra.mxu0 0.0
    %288 = vmatpush.msra.mxu0 0.0
    %289 = vmatpush.msra.mxu0 0.0
    %290 = vmatpush.msra.mxu0 0.0
    %291 = vmatpush.msra.mxu0 0.0
    %292 = vmatpush.msra.mxu0 0.0
    %293 = vmatpush.msra.mxu0 0.0
    %294 = vmatpush.msra.mxu0 0.0
    %295 = vmatpush.msra.mxu0 0.0
    %296 = vmatpush.msra.mxu0 0.0
    %297 = vmatpush.msra.mxu0 %v194
    %298 = vmatpush.msra.mxu0 %v186
    %299 = vmatpush.msra.mxu0 %v178
    %300 = vmatpush.msra.mxu0 %v170
    %301 = vmatmul.f32.gmra.mxu0 %v234
    %v302 = vpop.f32.mrf.mxu0
    %v303 = vadd.f32 %v226, %v302
    %304 = vmatmul.f32.gmra.mxu0 %v237
    %v305 = vpop.f32.mrf.mxu0
    %v306 = vadd.f32 %v226, %v305
    %307 = vdwg.mxu0
    %308 = vmatpush.msra.mxu0 0.0
    %309 = vmatpush.msra.mxu0 0.0
    %310 = vmatpush.msra.mxu0 0.0
    %311 = vmatpush.msra.mxu0 0.0
    %312 = vmatpush.msra.mxu0 0.0
    %313 = vmatpush.msra.mxu0 0.0
    %314 = vmatpush.msra.mxu0 0.0
    %315 = vmatpush.msra.mxu0 0.0
    %316 = vmatpush.msra.mxu0 0.0
    %317 = vmatpush.msra.mxu0 0.0
    %318 = vmatpush.msra.mxu0 0.0
    %319 = vmatpush.msra.mxu0 0.0
    %320 = vmatpush.msra.mxu0 %v195
    %321 = vmatpush.msra.mxu0 %v187
    %322 = vmatpush.msra.mxu0 %v179
    %323 = vmatpush.msra.mxu0 %v171
    %324 = vmatmul.f32.gmra.mxu0 %v234
    %v325 = vpop.f32.mrf.mxu0
    %v326 = vadd.f32 %v227, %v325
    %327 = vmatmul.f32.gmra.mxu0 %v237
    %v328 = vpop.f32.mrf.mxu0
    %v329 = vadd.f32 %v227, %v328
    %330 = vdwg.mxu0
    %331 = vmatpush.msra.mxu0 0.0
    %332 = vmatpush.msra.mxu0 0.0
    %333 = vmatpush.msra.mxu0 0.0
    %334 = vmatpush.msra.mxu0 0.0
    %335 = vmatpush.msra.mxu0 0.0
    %336 = vmatpush.msra.mxu0 0.0
    %337 = vmatpush.msra.mxu0 0.0
    %338 = vmatpush.msra.mxu0 0.0
    %339 = vmatpush.msra.mxu0 0.0
    %340 = vmatpush.msra.mxu0 0.0
    %341 = vmatpush.msra.mxu0 0.0
    %342 = vmatpush.msra.mxu0 0.0
    %343 = vmatpush.msra.mxu0 %v196
    %344 = vmatpush.msra.mxu0 %v188
    %345 = vmatpush.msra.mxu0 %v180
    %346 = vmatpush.msra.mxu0 %v172
    %347 = vmatmul.f32.gmra.mxu0 %v234
    %v348 = vpop.f32.mrf.mxu0
    %v349 = vadd.f32 %v228, %v348
    %350 = vmatmul.f32.gmra.mxu0 %v237
    %v351 = vpop.f32.mrf.mxu0
    %v352 = vadd.f32 %v228, %v351
    %353 = vdwg.mxu0
    %354 = vmatpush.msra.mxu0 0.0
    %355 = vmatpush.msra.mxu0 0.0
    %356 = vmatpush.msra.mxu0 0.0
    %357 = vmatpush.msra.mxu0 0.0
    %358 = vmatpush.msra.mxu0 0.0
    %359 = vmatpush.msra.mxu0 0.0
    %360 = vmatpush.msra.mxu0 0.0
    %361 = vmatpush.msra.mxu0 0.0
    %362 = vmatpush.msra.mxu0 0.0
    %363 = vmatpush.msra.mxu0 0.0
    %364 = vmatpush.msra.mxu0 0.0
    %365 = vmatpush.msra.mxu0 0.0
    %366 = vmatpush.msra.mxu0 %v197
    %367 = vmatpush.msra.mxu0 %v189
    %368 = vmatpush.msra.mxu0 %v181
    %369 = vmatpush.msra.mxu0 %v173
    %370 = vmatmul.f32.gmra.mxu0 %v234
    %v371 = vpop.f32.mrf.mxu0
    %v372 = vadd.f32 %v229, %v371
    %373 = vmatmul.f32.gmra.mxu0 %v237
    %v374 = vpop.f32.mrf.mxu0
    %v375 = vadd.f32 %v229, %v374
    %376 = vdwg.mxu0
    %377 = vmatpush.msra.mxu0 0.0
    %378 = vmatpush.msra.mxu0 0.0
    %379 = vmatpush.msra.mxu0 0.0
    %380 = vmatpush.msra.mxu0 0.0
    %381 = vmatpush.msra.mxu0 0.0
    %382 = vmatpush.msra.mxu0 0.0
    %383 = vmatpush.msra.mxu0 0.0
    %384 = vmatpush.msra.mxu0 0.0
    %385 = vmatpush.msra.mxu0 0.0
    %386 = vmatpush.msra.mxu0 0.0
    %387 = vmatpush.msra.mxu0 0.0
    %388 = vmatpush.msra.mxu0 0.0
    %389 = vmatpush.msra.mxu0 %v198
    %390 = vmatpush.msra.mxu0 %v190
    %391 = vmatpush.msra.mxu0 %v182
    %392 = vmatpush.msra.mxu0 %v174
    %393 = vmatmul.f32.gmra.mxu0 %v234
    %v394 = vpop.f32.mrf.mxu0
    %v395 = vadd.f32 %v230, %v394
    %396 = vmatmul.f32.gmra.mxu0 %v237
    %v397 = vpop.f32.mrf.mxu0
    %v398 = vadd.f32 %v230, %v397
    %399 = vdwg.mxu0
    %400 = vmatpush.msra.mxu0 0.0
    %401 = vmatpush.msra.mxu0 0.0
    %402 = vmatpush.msra.mxu0 0.0
    %403 = vmatpush.msra.mxu0 0.0
    %404 = vmatpush.msra.mxu0 0.0
    %405 = vmatpush.msra.mxu0 0.0
    %406 = vmatpush.msra.mxu0 0.0
    %407 = vmatpush.msra.mxu0 0.0
    %408 = vmatpush.msra.mxu0 0.0
    %409 = vmatpush.msra.mxu0 0.0
    %410 = vmatpush.msra.mxu0 0.0
    %411 = vmatpush.msra.mxu0 0.0
    %412 = vmatpush.msra.mxu0 %v199
    %413 = vmatpush.msra.mxu0 %v191
    %414 = vmatpush.msra.mxu0 %v183
    %415 = vmatpush.msra.mxu0 %v175
    %416 = vmatmul.f32.gmra.mxu0 %v234
    %v417 = vpop.f32.mrf.mxu0
    %v418 = vadd.f32 %v231, %v417
    %419 = vmatmul.f32.gmra.mxu0 %v237
    %v420 = vpop.f32.mrf.mxu0
    %v421 = vadd.f32 %v231, %v420
    %422 = vdwg.mxu0
    %v423 = vadd.f32 %v257, %v280
    %v424 = vadd.f32 %v423, %v303
    %v425 = vadd.f32 %v424, %v326
    %v426 = vadd.f32 %v425, %v349
    %v427 = vadd.f32 %v426, %v372
    %v428 = vadd.f32 %v427, %v395
    %v429 = vadd.f32 %v428, %v418
    %430 = vadd.xlane.f32.xlu0 %v429
    %v431 = vpop.xlane.xlu0 %430
    %v432 = vadd.f32 %v260, %v283
    %v433 = vadd.f32 %v432, %v306
    %v434 = vadd.f32 %v433, %v329
    %v435 = vadd.f32 %v434, %v352
    %v436 = vadd.f32 %v435, %v375
    %v437 = vadd.f32 %v436, %v398
    %v438 = vadd.f32 %v437, %v421
    %439 = vadd.xlane.f32.xlu0 %v438
    %v440 = vpop.xlane.xlu0 %439
    %v441 = vmul.f32 %v431, 0.0009765625
    %v442 = vmul.f32 %v440, 0.0009765625
    %v443 = vmul.f32 %v257, %v257
    %v444 = vmul.f32 %v280, %v280
    %v445 = vmul.f32 %v303, %v303
    %v446 = vmul.f32 %v326, %v326
    %v447 = vmul.f32 %v349, %v349
    %v448 = vmul.f32 %v372, %v372
    %v449 = vmul.f32 %v395, %v395
    %v450 = vmul.f32 %v418, %v418
    %v451 = vmul.f32 %v260, %v260
    %v452 = vmul.f32 %v283, %v283
    %v453 = vmul.f32 %v306, %v306
    %v454 = vmul.f32 %v329, %v329
    %v455 = vmul.f32 %v352, %v352
    %v456 = vmul.f32 %v375, %v375
    %v457 = vmul.f32 %v398, %v398
    %v458 = vmul.f32 %v421, %v421
    %v459 = vadd.f32 %v443, %v444
    %v460 = vadd.f32 %v459, %v445
    %v461 = vadd.f32 %v460, %v446
    %v462 = vadd.f32 %v461, %v447
    %v463 = vadd.f32 %v462, %v448
    %v464 = vadd.f32 %v463, %v449
    %v465 = vadd.f32 %v464, %v450
    %466 = vadd.xlane.f32.xlu0 %v465
    %v467 = vpop.xlane.xlu0 %466
    %v468 = vadd.f32 %v451, %v452
    %v469 = vadd.f32 %v468, %v453
    %v470 = vadd.f32 %v469, %v454
    %v471 = vadd.f32 %v470, %v455
    %v472 = vadd.f32 %v471, %v456
    %v473 = vadd.f32 %v472, %v457
    %v474 = vadd.f32 %v473, %v458
    %475 = vadd.xlane.f32.xlu0 %v474
    %v476 = vpop.xlane.xlu0 %475
    %v477 = vmul.f32 %v467, 0.0009765625
    %v478 = vmul.f32 %v476, 0.0009765625
    %v479 = vmul.f32 %v441, %v441
    %v480 = vmul.f32 %v442, %v442
    %v481 = vsub.f32 %v477, %v479
    %v482 = vsub.f32 %v478, %v480
    %v483 = vsub.f32 %v257, %v441
    %v484 = vsub.f32 %v280, %v441
    %v485 = vsub.f32 %v303, %v441
    %v486 = vsub.f32 %v326, %v441
    %v487 = vsub.f32 %v349, %v441
    %v488 = vsub.f32 %v372, %v441
    %v489 = vsub.f32 %v395, %v441
    %v490 = vsub.f32 %v418, %v441
    %v491 = vsub.f32 %v260, %v442
    %v492 = vsub.f32 %v283, %v442
    %v493 = vsub.f32 %v306, %v442
    %v494 = vsub.f32 %v329, %v442
    %v495 = vsub.f32 %v352, %v442
    %v496 = vsub.f32 %v375, %v442
    %v497 = vsub.f32 %v398, %v442
    %v498 = vsub.f32 %v421, %v442
    %v499 = vadd.f32 %v481, 1e-05
    %v500 = vadd.f32 %v482, 1e-05
    %v501 = vrsqrt.pop %v499
    %v502 = vmul.f32 %v501, %v499
    %v503 = vmul.f32 %v502, %v501
    %v504 = vmul.f32 0.5, %v503
    %v505 = vsub.f32 1.5, %v504
    %v506 = vmul.f32 %v501, %v505
    %vm507 = vweird.f32 %v499
    %vm508 = vweird.f32 %v501
    %vm509 = vmor %vm507, %vm508
    %v510 = vsel %vm509, %v501, %v506
    %v511 = vrsqrt.pop %v500
    %v512 = vmul.f32 %v511, %v500
    %v513 = vmul.f32 %v512, %v511
    %v514 = vmul.f32 0.5, %v513
    %v515 = vsub.f32 1.5, %v514
    %v516 = vmul.f32 %v511, %v515
    %vm517 = vweird.f32 %v500
    %vm518 = vweird.f32 %v511
    %vm519 = vmor %vm517, %vm518
    %v520 = vsel %vm519, %v511, %v516
    %v521 = vmul.f32 %v483, %v510
    %v522 = vmul.f32 %v484, %v510
    %v523 = vmul.f32 %v485, %v510
    %v524 = vmul.f32 %v486, %v510
    %v525 = vmul.f32 %v487, %v510
    %v526 = vmul.f32 %v488, %v510
    %v527 = vmul.f32 %v489, %v510
    %v528 = vmul.f32 %v490, %v510
    %v529 = vmul.f32 %v491, %v520
    %v530 = vmul.f32 %v492, %v520
    %v531 = vmul.f32 %v493, %v520
    %v532 = vmul.f32 %v494, %v520
    %v533 = vmul.f32 %v495, %v520
    %v534 = vmul.f32 %v496, %v520
    %v535 = vmul.f32 %v497, %v520
    %v536 = vmul.f32 %v498, %v520
    %v537 = vperm.slane %v200, 1
    %v538 = vperm.slane %v200, 5
    %v539 = vperm.slane %v201, 1
    %v540 = vperm.slane %v201, 5
    %v541 = vperm.slane %v202, 1
    %v542 = vperm.slane %v202, 5
    %v543 = vperm.slane %v203, 1
    %v544 = vperm.slane %v203, 5
    %v553 = vperm.slane %v537, 1
    %v554 = vperm.slane %v538, 1
    %v555 = vperm.slane %v539, 1
    %v556 = vperm.slane %v540, 1
    %v557 = vperm.slane %v541, 1
    %v558 = vperm.slane %v542, 1
    %v559 = vperm.slane %v543, 1
    %v560 = vperm.slane %v544, 1
    %v561 = vmul.f32 %v521, %v553
    %v562 = vmul.f32 %v522, %v554
    %v563 = vmul.f32 %v523, %v555
    %v564 = vmul.f32 %v524, %v556
    %v565 = vmul.f32 %v525, %v557
    %v566 = vmul.f32 %v526, %v558
    %v567 = vmul.f32 %v527, %v559
    %v568 = vmul.f32 %v528, %v560
    %v569 = vmul.f32 %v529, %v553
    %v570 = vmul.f32 %v530, %v554
    %v571 = vmul.f32 %v531, %v555
    %v572 = vmul.f32 %v532, %v556
    %v573 = vmul.f32 %v533, %v557
    %v574 = vmul.f32 %v534, %v558
    %v575 = vmul.f32 %v535, %v559
    %v576 = vmul.f32 %v536, %v560
    %v577 = vperm.slane %v200, 2
    %v578 = vperm.slane %v200, 6
    %v579 = vperm.slane %v201, 2
    %v580 = vperm.slane %v201, 6
    %v581 = vperm.slane %v202, 2
    %v582 = vperm.slane %v202, 6
    %v583 = vperm.slane %v203, 2
    %v584 = vperm.slane %v203, 6
    %v593 = vperm.slane %v577, 2
    %v594 = vperm.slane %v578, 2
    %v595 = vperm.slane %v579, 2
    %v596 = vperm.slane %v580, 2
    %v597 = vperm.slane %v581, 2
    %v598 = vperm.slane %v582, 2
    %v599 = vperm.slane %v583, 2
    %v600 = vperm.slane %v584, 2
    %v601 = vadd.f32 %v561, %v593
    %v602 = vadd.f32 %v562, %v594
    %v603 = vadd.f32 %v563, %v595
    %v604 = vadd.f32 %v564, %v596
    %v605 = vadd.f32 %v565, %v597
    %v606 = vadd.f32 %v566, %v598
    %v607 = vadd.f32 %v567, %v599
    %v608 = vadd.f32 %v568, %v600
    %v609 = vadd.f32 %v569, %v593
    %v610 = vadd.f32 %v570, %v594
    %v611 = vadd.f32 %v571, %v595
    %v612 = vadd.f32 %v572, %v596
    %v613 = vadd.f32 %v573, %v597
    %v614 = vadd.f32 %v574, %v598
    %v615 = vadd.f32 %v575, %v599
    %v616 = vadd.f32 %v576, %v600
    %v617 = vmax.f32 %v601, 0.0
    %v618 = vmax.f32 %v602, 0.0
    %v619 = vmax.f32 %v603, 0.0
    %v620 = vmax.f32 %v604, 0.0
    %v621 = vmax.f32 %v605, 0.0
    %v622 = vmax.f32 %v606, 0.0
    %v623 = vmax.f32 %v607, 0.0
    %v624 = vmax.f32 %v608, 0.0
    %v625 = vmax.f32 %v609, 0.0
    %v626 = vmax.f32 %v610, 0.0
    %v627 = vmax.f32 %v611, 0.0
    %v628 = vmax.f32 %v612, 0.0
    %v629 = vmax.f32 %v613, 0.0
    %v630 = vmax.f32 %v614, 0.0
    %v631 = vmax.f32 %v615, 0.0
    %v632 = vmax.f32 %v616, 0.0
    %633 = vst [vmem:[#allocation10] sm:$0xff] %v617
    %634 = vst [vmem:[#allocation10 + $0x8] sm:$0xff] %v618
    %635 = vst [vmem:[#allocation10 + $0x10] sm:$0xff] %v619
    %636 = vst [vmem:[#allocation10 + $0x18] sm:$0xff] %v620
    %637 = vst [vmem:[#allocation10 + $0x20] sm:$0xff] %v621
    %638 = vst [vmem:[#allocation10 + $0x28] sm:$0xff] %v622
    %639 = vst [vmem:[#allocation10 + $0x30] sm:$0xff] %v623
    %640 = vst [vmem:[#allocation10 + $0x38] sm:$0xff] %v624
    %641 = vst [vmem:[#allocation10 + $0x40] sm:$0xff] %v625
    %642 = vst [vmem:[#allocation10 + $0x48] sm:$0xff] %v626
    %643 = vst [vmem:[#allocation10 + $0x50] sm:$0xff] %v627
    %644 = vst [vmem:[#allocation10 + $0x58] sm:$0xff] %v628
    %645 = vst [vmem:[#allocation10 + $0x60] sm:$0xff] %v629
    %646 = vst [vmem:[#allocation10 + $0x68] sm:$0xff] %v630
    %647 = vst [vmem:[#allocation10 + $0x70] sm:$0xff] %v631
    %648 = vst [vmem:[#allocation10 + $0x78] sm:$0xff] %v632
    // Predicated region
    $region34: #{tpu_custom_call.1} parent=1 // pred_check
      _
    $region35: #{tpu_custom_call.1} parent=1 // pred_check_branch
      %650 = sbr.rel (0) target = $region37
    $region36: #{tpu_custom_call.1} parent=1 // pred_region
      %652 = vsyncadd [#allocation4], 0
      %s653 = sshll.u32 [#allocation10], 4
      %s654 = int_to_ptr.vmem [resolvable:$true] %s653
      %s655 = sshll.u32 %s4, 4
      %s656 = int_to_ptr.hbm [resolvable:$true] %s655
      %661 = dma.vmem_to_hbm [thread:$0]  %s654, 2048, %s656, [#allocation4], 1024, 1024, 64
    $region37: #{tpu_custom_call.1} parent=1 // pred_fallthru
      _
    // Predicated region
    $region38: #{tpu_custom_call.1} parent=1 // pred_check
      _
    $region39: #{tpu_custom_call.1} parent=1 // pred_check_branch
      %663 = sbr.rel (0) target = $region41
    $region40: #{tpu_custom_call.1} parent=1 // pred_region
      %665 = dma.done [#allocation4], 2048
    $region41: #{tpu_custom_call.1} parent=1 // pred_fallthru
      _
    %666 = vsyncpa [#allocation3], 1
    %667 = vsyncpa [#allocation6], 1
    %668 = vsyncpa [#allocation9], 1
    %669 = vsyncpa [#allocation4], 1

</llo_original>
